<compile_context>
chip_gen: v7x
topology: tpu7x:2x2x1
jax: 0.10.0
libtpu: 0.0.40
codegen_flags: <defaults>
</compile_context>

<pallas_src>
import jax
import jax.numpy as jnp
from jax.experimental import pallas as pl
from jax.experimental.pallas import tpu as pltpu


def _conv1x1_kernel(x_ref, w_ref, o_ref):
    # x_ref: (nb, Cin, thw)  spatial tile of nb NCHW images (HW flattened)
    # w_ref: (Cout, Cin)     full 1x1-conv weight
    # o_ref: (nb, Cout, thw) lane-dense output tile
    w = w_ref[...]
    nb = x_ref.shape[0]
    for b in range(nb):  # nb is a small static block dim -> unrolled matmuls
        o_ref[b] = jnp.dot(
            w, x_ref[b], preferred_element_type=jnp.float32
        ).astype(o_ref.dtype)


def _round_up(x: int, m: int) -> int:
    return ((x + m - 1) // m) * m


def yolo_head_forward(x_nchw: jax.Array, weight_oihw: jax.Array, *, max_thw: int = 8192):
    """Forward pass of YoloHead (nn.Conv2d(inc, outc, 1, 1, 0, bias=False)).

    x_nchw:      (N, Cin, H, W)    float32 or bfloat16
    weight_oihw: (Cout, Cin, 1, 1) PyTorch OIHW layout
    returns:     (N, Cout, H, W)   same dtype as x
    """
    N, Cin, H, W = x_nchw.shape
    Cout = weight_oihw.shape[0]
    HW = H * W
    itemsize = jnp.dtype(x_nchw.dtype).itemsize

    # Free (contiguous) reshapes -- no transposes, no extra HBM passes.
    x3 = x_nchw.reshape(N, Cin, HW)
    w2 = weight_oihw.reshape(Cout, Cin).astype(x_nchw.dtype)  # tiny one-time cast

    # --- spatial tile: full extent when it fits, else lane-dense multiple of 128.
    if HW <= max_thw:
        thw = HW
    else:
        assert max_thw % 128 == 0, "max_thw must be a multiple of 128 when tiling"
        thw = max_thw

    # --- fold several images per step for tiny feature maps (amortize step overhead).
    nb = 1
    if N > 1 and HW <= 512:
        per_image_bytes = (Cin + Cout) * thw * itemsize
        target_payload = 2 << 20  # ~2 MiB of x+out per grid step
        nb = max(1, min(N, target_payload // max(per_image_bytes, 1)))

    # --- guarantee >= 2 grid steps when possible so both v7x TensorCores get work.
    if pl.cdiv(N, nb) * pl.cdiv(HW, thw) == 1:
        if N >= 2:
            nb = (N + 1) // 2                     # split the batch into 2 tiles
        elif HW >= 256:
            thw = _round_up(pl.cdiv(HW, 2), 128)  # split the spatial dim into 2 tiles

    grid = (pl.cdiv(N, nb), pl.cdiv(HW, thw))

    # --- raise scoped VMEM only if the chosen tiles need it (v5e default is 16 MiB).
    vmem_est = 2 * nb * (Cin + Cout) * thw * itemsize + 2 * Cout * Cin * itemsize
    vmem_limit = None
    if vmem_est > (12 << 20):
        vmem_limit = min(vmem_est + (8 << 20), 48 << 20)

    cost = pl.CostEstimate(
        flops=2 * N * HW * Cin * Cout,
        transcendentals=0,
        bytes_accessed=(N * Cin * HW + Cin * Cout + N * Cout * HW) * itemsize,
    )

    out3 = pl.pallas_call(
        _conv1x1_kernel,
        out_shape=jax.ShapeDtypeStruct((N, Cout, HW), x_nchw.dtype),
        grid_spec=pltpu.PrefetchScalarGridSpec(
            num_scalar_prefetch=0,
            grid=grid,
            in_specs=[
                pl.BlockSpec((nb, Cin, thw), lambda i, j: (i, 0, j)),
                pl.BlockSpec((Cout, Cin), lambda i, j: (0, 0)),
            ],
            out_specs=pl.BlockSpec((nb, Cout, thw), lambda i, j: (i, 0, j)),
        ),
        compiler_params=pltpu.CompilerParams(
            dimension_semantics=("parallel", "parallel"),
            vmem_limit_bytes=vmem_limit,
        ),
        cost_estimate=cost,
    )(x3, w2)

    # Free reshape back to NCHW.
    return out3.reshape(N, Cout, H, W)


if __name__ == "__main__":
    key = jax.random.PRNGKey(0)
    kx, kw, kx2, kx3 = jax.random.split(key, 4)

    # Module defaults: inchannel=128, outchannel=55.
    N, Cin, H, W = 2, 128, 8, 8
    Cout = 55
    x = jax.random.normal(kx, (N, Cin, H, W), dtype=jnp.float32)
    weight = jax.random.normal(kw, (Cout, Cin, 1, 1), dtype=jnp.float32) * 0.05
    w2d = weight.reshape(Cout, Cin)

    # 1) Small feature map, N=2: exercises batch folding + >=2-step guarantee.
    out = yolo_head_forward(x, weight)
    jax.block_until_ready(out)
    ref = jnp.einsum("nchw,oc->nohw", x, w2d)
    assert out.shape == (N, Cout, H, W)
    assert jnp.allclose(out, ref, atol=1e-3, rtol=1e-3)

    # 2) Non-divisible spatial tiling with a masked tail tile (HW=400, tile=128).
    H2, W2 = 20, 20
    x2 = jax.random.normal(kx2, (N, Cin, H2, W2), dtype=jnp.float32)
    out2 = yolo_head_forward(x2, weight, max_thw=128)
    jax.block_until_ready(out2)
    ref2 = jnp.einsum("nchw,oc->nohw", x2, w2d)
    assert out2.shape == (N, Cout, H2, W2)
    assert jnp.allclose(out2, ref2, atol=1e-3, rtol=1e-3)

    # 3) Single image: spatial dim is split so both v7x TensorCores get a step.
    H3, W3 = 40, 40
    x3 = jax.random.normal(kx3, (1, Cin, H3, W3), dtype=jnp.float32)
    out3 = yolo_head_forward(x3, weight)
    jax.block_until_ready(out3)
    ref3 = jnp.einsum("nchw,oc->nohw", x3, w2d)
    assert out3.shape == (1, Cout, H3, W3)
    assert jnp.allclose(out3, ref3, atol=1e-3, rtol=1e-3)

    # 4) bf16 end-to-end path (halves HBM traffic; f32 MXU accumulation kept).
    xb = x.astype(jnp.bfloat16)
    outb = yolo_head_forward(xb, weight)
    jax.block_until_ready(outb)
    refb = jnp.einsum("nchw,oc->nohw", xb.astype(jnp.float32), w2d)
    assert outb.dtype == jnp.bfloat16
    assert jnp.allclose(outb.astype(jnp.float32), refb, atol=5e-2, rtol=5e-2)

    print("KERNEL_OK")
</pallas_src>

<mosaic_0001>
module attributes {stable_mosaic.version = 11 : i64} {
  func.func @_conv1x1_kernel(%arg0: i32, %arg1: i32, %arg2: memref<1x128x64xf32, #tpu.memory_space<vmem>>, %arg3: memref<55x128xf32, #tpu.memory_space<vmem>>, %arg4: memref<1x55x64xf32, #tpu.memory_space<vmem>>) attributes {dimension_semantics = [#tpu.dimension_semantics<parallel>, #tpu.dimension_semantics<parallel>], iteration_bounds = array<i64: 2, 1>, scalar_prefetch = 0 : i64, scratch_operands = 0 : i64, tpu.core_type = #tpu.core_type<tc>, window_params = [{transform_indices = @transform_0, window_bounds = array<i64: 1, 128, 64>}, {pipeline_mode = #tpu.pipeline_mode<synchronous>, transform_indices = @transform_1, window_bounds = array<i64: 55, 128>}, {transform_indices = @transform_2, window_bounds = array<i64: 1, 55, 64>}]} {
    %c0 = arith.constant 0 : index
    %c0_0 = arith.constant 0 : index
    %0 = vector.load %arg3[%c0, %c0_0] : memref<55x128xf32, #tpu.memory_space<vmem>>, vector<55x128xf32>
    %c0_1 = arith.constant 0 : index
    %c0_2 = arith.constant 0 : index
    %c0_3 = arith.constant 0 : index
    %1 = vector.load %arg2[%c0_1, %c0_2, %c0_3] : memref<1x128x64xf32, #tpu.memory_space<vmem>>, vector<1x128x64xf32>
    %2 = vector.shape_cast %1 : vector<1x128x64xf32> to vector<128x64xf32>
    %cst = arith.constant dense<0.000000e+00> : vector<55x64xf32>
    %3 = tpu.matmul %0, %2, %cst {dimension_numbers = #tpu.dot_dimension_numbers<[1], [0], [0], [1], [0, 0, 1, 1], [], []>} : vector<55x128xf32>, vector<128x64xf32>, vector<55x64xf32> -> vector<55x64xf32>
    %c0_4 = arith.constant 0 : index
    %c0_5 = arith.constant 0 : index
    %c0_6 = arith.constant 0 : index
    %4 = vector.load %arg4[%c0_4, %c0_5, %c0_6] : memref<1x55x64xf32, #tpu.memory_space<vmem>>, vector<1x55x64xf32>
    %5 = vector.shape_cast %4 : vector<1x55x64xf32> to vector<55x64xf32>
    %6 = vector.shape_cast %3 : vector<55x64xf32> to vector<1x55x64xf32>
    tpu.vector_store %arg4[%c0_4, %c0_5, %c0_6], %6 {strides = array<i32>} : memref<1x55x64xf32, #tpu.memory_space<vmem>>, vector<1x55x64xf32>,
    return
  }
  func.func @transform_0(%arg0: i32, %arg1: i32) -> (i32, i32, i32) {
    %c0_i32 = arith.constant 0 : i32
    %c0_i32_0 = arith.constant 0 : i32
    return %arg0, %c0_i32, %arg1 : i32, i32, i32
  }
  func.func @transform_1(%arg0: i32, %arg1: i32) -> (i32, i32) {
    %c0_i32 = arith.constant 0 : i32
    %c0_i32_0 = arith.constant 0 : i32
    %c0_i32_1 = arith.constant 0 : i32
    return %c0_i32, %c0_i32_0 : i32, i32
  }
  func.func @transform_2(%arg0: i32, %arg1: i32) -> (i32, i32, i32) {
    %c0_i32 = arith.constant 0 : i32
    %c0_i32_0 = arith.constant 0 : i32
    return %arg0, %c0_i32, %arg1 : i32, i32, i32
  }
}

</mosaic_0001>

<llo_original>
// kernel: tpu_custom_call.1
$region0: #{tpu_custom_call.1}
  #allocation0 [shape = 'u32[]', space=smem, size = 0x4, offset = 0x4, fixed_abs, tag = 'smem constant byte address 0x4 - core index']
  #allocation1 [shape = 'u32[144,128]{1,0:T(1,128)}', space=vmem, size = 0x12000, scoped, tag = 'internal scratch']
  %s0 = inlined_call_operand.vmem [shape: f32[2,128,64], index: 0, kind: input, shape index: {}]
  %s1 = inlined_call_operand.vmem [shape: f32[55,128], index: 1, kind: input, shape index: {}]
  %s2 = inlined_call_operand.vmem [shape: f32[2,55,64], index: 2, kind: output, shape index: {}]
  %s3 = sld [smem:[#allocation0]]
  $region41: #{tpu_custom_call.1} parent=0
    _
  %s5 = ssub.s32 1, %s3
  %s6 = scalar_select 0, %s5, %s3
  loop: start=0, step=1, limit=4
  $region2: #{tpu_custom_call.1} parent=0 // loop_pre_header
    _
  $region3: #{tpu_custom_call.1} parent=0 // loop_header
    %s8 = sphi 0, %s12
    %p9 = scmp.ge.s32.totalorder %s8, 4
    %s15 = sphi 0, %s27
    %s16 = sphi 0, %s23
    %s17 = sphi 0, %s15
    %s18 = sphi 0, %s16
    %s19 = sphi 0, %s17
    %s20 = sphi 0, %s18
    %s32 = sphi 0, %s34
    %s35 = sphi 0, %s32
    %s36 = sphi 0, %s35
    %s52 = sphi 0, %s36
    %s56 = sphi 0, %s56
    %s58 = sphi 0, %s56
    %s59 = sphi 0, %s58
    %s73 = sphi 0, %s59
    %s81 = sphi 0, %s83
    %s84 = sphi 0, %s81
    %s85 = sphi 0, %s84
    %s101 = sphi 0, %s85
  $region4: #{tpu_custom_call.1} parent=0 // loop_header_branch
    %11 = sbr.rel (%p9) target = $region8
  $region5: #{tpu_custom_call.1} parent=0 // loop_body
    %s13 = ssub.s32 %s8, 1
    %s14 = ssub.s32 %s8, 2
    %s21 = sadd.s32 1, %s16
    %p22 = scmp.ge.s32.totalorder %s21, 1
    %s23 = scalar_select %p22, 0, %s21
    %s24 = sadd.s32 1, %s15
    %s25 = scalar_select %p22, %s24, %s15
    %p26 = scmp.ge.s32.totalorder %s25, 2
    %s27 = scalar_select %p26, 0, %s25
    %s28 = ssub.s32 %s15, %s27
    %s29 = ssub.s32 %s16, %s23
    %s30 = sor.u32 %s28, %s29
    %p31 = scmp.eq.s32.totalorder %s30, 0
    %s33 = sadd.s32 %s32, 1
    %s34 = scalar_select %p31, %s32, %s33
    %p37 = pneg %p31
    %p38 = scmp.eq.s32.totalorder %s8, 1
    %p39 = por %p37, %p38
    %p40 = scmp.ne.s32.totalorder %s32, %s35
    %p41 = scmp.eq.s32.totalorder %s8, 0
    %p42 = por %p40, %p41
    %p43 = scmp.ne.s32.totalorder %s32, %s35
    %p44 = scmp.eq.s32.totalorder %s13, 1
    %p45 = por %p43, %p44
    %p46 = scmp.ne.s32.totalorder %s35, %s36
    %p47 = scmp.eq.s32.totalorder %s13, 0
    %p48 = por %p46, %p47
    %p49 = scmp.ne.s32.totalorder %s35, %s36
    %p50 = scmp.eq.s32.totalorder %s14, 1
    %p51 = por %p49, %p50
    %p53 = scmp.ne.s32.totalorder %s36, %s52
    %p54 = scmp.eq.s32.totalorder %s14, 0
    %p55 = por %p53, %p54
    %s57 = sadd.s32 %s56, 1
    %p60 = scmp.eq.s32.totalorder %s8, 1
    %p61 = scmp.ne.s32.totalorder %s56, %s58
    %p62 = scmp.eq.s32.totalorder %s8, 0
    %p63 = por %p61, %p62
    %p64 = scmp.ne.s32.totalorder %s56, %s58
    %p65 = scmp.eq.s32.totalorder %s13, 1
    %p66 = por %p64, %p65
    %p67 = scmp.ne.s32.totalorder %s58, %s59
    %p68 = scmp.eq.s32.totalorder %s13, 0
    %p69 = por %p67, %p68
    %p70 = scmp.ne.s32.totalorder %s58, %s59
    %p71 = scmp.eq.s32.totalorder %s14, 1
    %p72 = por %p70, %p71
    %p74 = scmp.ne.s32.totalorder %s59, %s73
    %p75 = scmp.eq.s32.totalorder %s14, 0
    %p76 = por %p74, %p75
    %s77 = ssub.s32 %s15, %s27
    %s78 = ssub.s32 %s16, %s23
    %s79 = sor.u32 %s77, %s78
    %p80 = scmp.eq.s32.totalorder %s79, 0
    %s82 = sadd.s32 %s81, 1
    %s83 = scalar_select %p80, %s81, %s82
    %p86 = pneg %p80
    %p87 = scmp.eq.s32.totalorder %s8, 1
    %p88 = por %p86, %p87
    %p89 = scmp.ne.s32.totalorder %s81, %s84
    %p90 = scmp.eq.s32.totalorder %s8, 0
    %p91 = por %p89, %p90
    %p92 = scmp.ne.s32.totalorder %s81, %s84
    %p93 = scmp.eq.s32.totalorder %s13, 1
    %p94 = por %p92, %p93
    %p95 = scmp.ne.s32.totalorder %s84, %s85
    %p96 = scmp.eq.s32.totalorder %s13, 0
    %p97 = por %p95, %p96
    %p98 = scmp.ne.s32.totalorder %s84, %s85
    %p99 = scmp.eq.s32.totalorder %s14, 1
    %p100 = por %p98, %p99
    %p102 = scmp.ne.s32.totalorder %s85, %s101
    %p103 = scmp.eq.s32.totalorder %s14, 0
    %p104 = por %p102, %p103
    %p105 = scmp.le.s32.totalorder 1, %s8
    %p106 = scmp.lt.s32.totalorder %s8, 3
    %p107 = pnand %p105, %p106
    %p108 = pneg %p107
    // Predicated region
    $region9: #{tpu_custom_call.1} parent=5 // pred_check
      _
    $region10: #{tpu_custom_call.1} parent=5 // pred_check_branch
      %110 = sbr.rel (%p107) target = $region12
    $region11: #{tpu_custom_call.1} parent=5 // pred_region
      %s111 = ssub.s32 %s8, 1
      // Predicated region
      $region13: #{tpu_custom_call.1} parent=11 // pred_check
        %p112 = pneg %p69
      $region14: #{tpu_custom_call.1} parent=11 // pred_check_branch
        %114 = sbr.rel (%p112) target = $region16
      $region15: #{tpu_custom_call.1} parent=11 // pred_region
        _
      $region16: #{tpu_custom_call.1} parent=11 // pred_fallthru
        _
    $region12: #{tpu_custom_call.1} parent=5 // pred_fallthru
      _
    %p115 = scmp.lt.s32.totalorder %s8, 2
    // Predicated region
    $region17: #{tpu_custom_call.1} parent=5 // pred_check
      %p116 = pneg %p115
    $region18: #{tpu_custom_call.1} parent=5 // pred_check_branch
      %118 = sbr.rel (%p116) target = $region20
    $region19: #{tpu_custom_call.1} parent=5 // pred_region
      // Predicated region
      $region21: #{tpu_custom_call.1} parent=19 // pred_check
        %p119 = pneg %p42
      $region22: #{tpu_custom_call.1} parent=19 // pred_check_branch
        %121 = sbr.rel (%p119) target = $region24
      $region23: #{tpu_custom_call.1} parent=19 // pred_region
        %p122 = scmp.lt.s32.totalorder %s15, 1
        %s123 = scalar_select %p122, %s15, 1
        %p124 = scmp.lt.s32.totalorder %s16, 0
        %s125 = scalar_select %p124, %s16, 0
        %s126 = smul.addr %s123, 16
        %s127 = sadd.s32 %s125, %s126
        %s128 = smul.addr %s127, 8
        %s129 = scalar_lea.vmem %s0, %s128
      $region24: #{tpu_custom_call.1} parent=19 // pred_fallthru
        _
    $region20: #{tpu_custom_call.1} parent=5 // pred_fallthru
      _
    %p130 = scmp.le.s32.totalorder 1, %s8
    %p131 = scmp.lt.s32.totalorder %s8, 3
    %p132 = pnand %p130, %p131
    %p133 = pneg %p132
    // Predicated region
    $region25: #{tpu_custom_call.1} parent=5 // pred_check
      _
    $region26: #{tpu_custom_call.1} parent=5 // pred_check_branch
      %135 = sbr.rel (%p132) target = $region28
    $region27: #{tpu_custom_call.1} parent=5 // pred_region
      %s136 = ssub.s32 %s8, 1
      %p137 = scmp.lt.s32.totalorder %s17, 1
      %s138 = scalar_select %p137, %s17, 1
      %p139 = scmp.lt.s32.totalorder %s18, 0
      %s140 = scalar_select %p139, %s18, 0
      %s141 = smul.addr %s138, 16
      %s142 = sadd.s32 %s140, %s141
      %s143 = smul.addr %s142, 8
      %s144 = scalar_lea.vmem %s0, %s143
      %p145 = pneg %p48
      %p146 = pneg %p45
      %p147 = pneg %p69
      %p148 = pneg %p66
      %p149 = pneg %p97
      %p150 = pneg %p94
      %p151 = scmp.lt.s32.totalorder %s17, 1
      %s152 = scalar_select %p151, %s17, 1
      %p153 = scmp.lt.s32.totalorder %s18, 0
      %s154 = scalar_select %p153, %s18, 0
      %s155 = smul.addr %s152, 7
      %s156 = sadd.s32 %s154, %s155
      %s157 = smul.addr %s156, 8
      %s158 = scalar_lea.vmem %s2, %s157
      %p159 = scmp.lt.s32.totalorder %s17, 1
      %s160 = scalar_select %p159, %s17, 1
      %p161 = scmp.lt.s32.totalorder %s18, 0
      %s162 = scalar_select %p161, %s18, 0
      %s163 = smul.addr %s160, 16
      %s164 = sadd.s32 %s162, %s163
      %s165 = smul.addr %s164, 8
      %s166 = scalar_lea.vmem %s0, %s165
      %p167 = scmp.lt.s32.totalorder %s17, 1
      %s168 = scalar_select %p167, %s17, 1
      %p169 = scmp.lt.s32.totalorder %s18, 0
      %s170 = scalar_select %p169, %s18, 0
      %s171 = smul.addr %s168, 7
      %s172 = sadd.s32 %s170, %s171
      %s173 = smul.addr %s172, 8
      %s174 = scalar_lea.vmem %s2, %s173
      %v175 = vld [vmem:[%s1] sm:$0xff]
      %v176 = vld [vmem:[%s1 + $0x8] sm:$0xff]
      %v177 = vld [vmem:[%s1 + $0x10] sm:$0xff]
      %v178 = vld [vmem:[%s1 + $0x18] sm:$0xff]
      %v179 = vld [vmem:[%s1 + $0x20] sm:$0xff]
      %v180 = vld [vmem:[%s1 + $0x28] sm:$0xff]
      %v181 = vld [vmem:[%s1 + $0x30] sm:$0x7f]
      %v182 = vld [vmem:[%s166] sm:$0xff]
      %v183 = vld [vmem:[%s166 + $0x8] sm:$0xff]
      %v184 = vld [vmem:[%s166 + $0x10] sm:$0xff]
      %v185 = vld [vmem:[%s166 + $0x18] sm:$0xff]
      %v186 = vld [vmem:[%s166 + $0x20] sm:$0xff]
      %v187 = vld [vmem:[%s166 + $0x28] sm:$0xff]
      %v188 = vld [vmem:[%s166 + $0x30] sm:$0xff]
      %v189 = vld [vmem:[%s166 + $0x38] sm:$0xff]
      %v190 = vld [vmem:[%s166 + $0x40] sm:$0xff]
      %v191 = vld [vmem:[%s166 + $0x48] sm:$0xff]
      %v192 = vld [vmem:[%s166 + $0x50] sm:$0xff]
      %v193 = vld [vmem:[%s166 + $0x58] sm:$0xff]
      %v194 = vld [vmem:[%s166 + $0x60] sm:$0xff]
      %v195 = vld [vmem:[%s166 + $0x68] sm:$0xff]
      %v196 = vld [vmem:[%s166 + $0x70] sm:$0xff]
      %v197 = vld [vmem:[%s166 + $0x78] sm:$0xff]
      %198 = vmatprep.subr.mxu0 0.0
      %199 = vmatpush1.msra.mxu0 %v182
      %200 = vmatprep.subr.mxu0 0.0
      %201 = vmatpush1.msra.mxu0 %v183
      %202 = vmatprep.subr.mxu0 0.0
      %203 = vmatpush1.msra.mxu0 %v184
      %204 = vmatprep.subr.mxu0 0.0
      %205 = vmatpush1.msra.mxu0 %v185
      %206 = vmatprep.subr.mxu0 0.0
      %207 = vmatpush1.msra.mxu0 %v186
      %208 = vmatprep.subr.mxu0 0.0
      %209 = vmatpush1.msra.mxu0 %v187
      %210 = vmatprep.subr.mxu0 0.0
      %211 = vmatpush1.msra.mxu0 %v188
      %212 = vmatprep.subr.mxu0 0.0
      %213 = vmatpush1.msra.mxu0 %v189
      %214 = vmatprep.subr.mxu0 0.0
      %215 = vmatpush1.msra.mxu0 %v190
      %216 = vmatprep.subr.mxu0 0.0
      %217 = vmatpush1.msra.mxu0 %v191
      %218 = vmatprep.subr.mxu0 0.0
      %219 = vmatpush1.msra.mxu0 %v192
      %220 = vmatprep.subr.mxu0 0.0
      %221 = vmatpush1.msra.mxu0 %v193
      %222 = vmatprep.subr.mxu0 0.0
      %223 = vmatpush1.msra.mxu0 %v194
      %224 = vmatprep.subr.mxu0 0.0
      %225 = vmatpush1.msra.mxu0 %v195
      %226 = vmatprep.subr.mxu0 0.0
      %227 = vmatpush1.msra.mxu0 %v196
      %228 = vmatprep.subr.mxu0 0.0
      %229 = vmatpush1.msra.mxu0 %v197
      %230 = vmatprep.subr.mxu0 0.0
      %231 = vmatpush1.msra.mxu0 0.0
      %232 = vmatprep.subr.mxu0 0.0
      %233 = vmatpush1.msra.mxu0 0.0
      %234 = vmatprep.subr.mxu0 0.0
      %235 = vmatpush1.msra.mxu0 0.0
      %236 = vmatprep.subr.mxu0 0.0
      %237 = vmatpush1.msra.mxu0 0.0
      %238 = vmatprep.subr.mxu0 0.0
      %239 = vmatpush1.msra.mxu0 0.0
      %240 = vmatprep.subr.mxu0 0.0
      %241 = vmatpush1.msra.mxu0 0.0
      %242 = vmatprep.subr.mxu0 0.0
      %243 = vmatpush1.msra.mxu0 0.0
      %244 = vmatprep.subr.mxu0 0.0
      %245 = vmatpush1.msra.mxu0 0.0
      %246 = vmatprep.subr.mxu0 0.0
      %247 = vmatpush1.msra.mxu0 0.0
      %248 = vmatprep.subr.mxu0 0.0
      %249 = vmatpush1.msra.mxu0 0.0
      %250 = vmatprep.subr.mxu0 0.0
      %251 = vmatpush1.msra.mxu0 0.0
      %252 = vmatprep.subr.mxu0 0.0
      %253 = vmatpush1.msra.mxu0 0.0
      %254 = vmatprep.subr.mxu0 0.0
      %255 = vmatpush1.msra.mxu0 0.0
      %256 = vmatprep.subr.mxu0 0.0
      %257 = vmatpush1.msra.mxu0 0.0
      %258 = vmatprep.subr.mxu0 0.0
      %259 = vmatpush1.msra.mxu0 0.0
      %260 = vmatprep.subr.mxu0 0.0
      %261 = vmatpush1.msra.mxu0 0.0
      %262 = vmatprep.mubr.f32.mxu0 0.0
      %263 = vmatmul.mubr.f32.gmra.mrb[0].mxu0 %v175
      %v264 = vpop.f32.mrb[0].mxu0
      %v265 = vadd.f32 0.0, %v264
      %v266 = vpop.f32.mrb[0].mxu0
      %267 = vmatprep.mubr.f32.mxu0 0.0
      %268 = vmatmul.mubr.f32.gmra.mrb[0].mxu0 %v176
      %v269 = vpop.f32.mrb[0].mxu0
      %v270 = vadd.f32 0.0, %v269
      %v271 = vpop.f32.mrb[0].mxu0
      %272 = vmatprep.mubr.f32.mxu0 0.0
      %273 = vmatmul.mubr.f32.gmra.mrb[0].mxu0 %v177
      %v274 = vpop.f32.mrb[0].mxu0
      %v275 = vadd.f32 0.0, %v274
      %v276 = vpop.f32.mrb[0].mxu0
      %277 = vmatprep.mubr.f32.mxu0 0.0
      %278 = vmatmul.mubr.f32.gmra.mrb[0].mxu0 %v178
      %v279 = vpop.f32.mrb[0].mxu0
      %v280 = vadd.f32 0.0, %v279
      %v281 = vpop.f32.mrb[0].mxu0
      %282 = vmatprep.mubr.f32.mxu0 0.0
      %283 = vmatmul.mubr.f32.gmra.mrb[0].mxu0 %v179
      %v284 = vpop.f32.mrb[0].mxu0
      %v285 = vadd.f32 0.0, %v284
      %v286 = vpop.f32.mrb[0].mxu0
      %287 = vmatprep.mubr.f32.mxu0 0.0
      %288 = vmatmul.mubr.f32.gmra.mrb[0].mxu0 %v180
      %v289 = vpop.f32.mrb[0].mxu0
      %v290 = vadd.f32 0.0, %v289
      %v291 = vpop.f32.mrb[0].mxu0
      %292 = vmatprep.mubr.f32.mxu0 0.0
      %293 = vmatmul.mubr.f32.gmra.mrb[0].mxu0 %v181
      %v294 = vpop.f32.mrb[0].mxu0
      %v295 = vadd.f32 0.0, %v294
      %v296 = vpop.f32.mrb[0].mxu0
      %297 = vdwg.mxu0
      %vm298 = vcmask 523264
      %299 = vst.msk [vmem:[%s174] sm:$0xff] %vm298, %v265
      %300 = vst.msk [vmem:[%s174 + $0x8] sm:$0xff] %vm298, %v270
      %301 = vst.msk [vmem:[%s174 + $0x10] sm:$0xff] %vm298, %v275
      %302 = vst.msk [vmem:[%s174 + $0x18] sm:$0xff] %vm298, %v280
      %303 = vst.msk [vmem:[%s174 + $0x20] sm:$0xff] %vm298, %v285
      %304 = vst.msk [vmem:[%s174 + $0x28] sm:$0xff] %vm298, %v290
      %vm305 = vcmask 522240
      %306 = vst.msk [vmem:[%s174 + $0x30] sm:$0x7f] %vm305, %v295
      %p307 = scmp.lt.s32.totalorder %s17, 1
      %s308 = scalar_select %p307, %s17, 1
      %p309 = scmp.lt.s32.totalorder %s18, 0
      %s310 = scalar_select %p309, %s18, 0
      %s311 = smul.addr %s308, 7
      %s312 = sadd.s32 %s310, %s311
      %s313 = smul.addr %s312, 8
      %s314 = scalar_lea.vmem %s2, %s313
      // Predicated region
      $region29: #{tpu_custom_call.1} parent=27 // pred_check
        %p315 = pneg %p94
      $region30: #{tpu_custom_call.1} parent=27 // pred_check_branch
        %317 = sbr.rel (%p315) target = $region32
      $region31: #{tpu_custom_call.1} parent=27 // pred_region
        _
      $region32: #{tpu_custom_call.1} parent=27 // pred_fallthru
        _
    $region28: #{tpu_custom_call.1} parent=5 // pred_fallthru
      _
    %p318 = scmp.le.s32.totalorder 2, %s8
    // Predicated region
    $region33: #{tpu_custom_call.1} parent=5 // pred_check
      %p319 = pneg %p318
    $region34: #{tpu_custom_call.1} parent=5 // pred_check_branch
      %321 = sbr.rel (%p319) target = $region36
    $region35: #{tpu_custom_call.1} parent=5 // pred_region
      %s322 = ssub.s32 %s8, 2
      // Predicated region
      $region37: #{tpu_custom_call.1} parent=35 // pred_check
        %p323 = pneg %p100
      $region38: #{tpu_custom_call.1} parent=35 // pred_check_branch
        %325 = sbr.rel (%p323) target = $region40
      $region39: #{tpu_custom_call.1} parent=35 // pred_region
        %p326 = scmp.lt.s32.totalorder %s19, 1
        %s327 = scalar_select %p326, %s19, 1
        %p328 = scmp.lt.s32.totalorder %s20, 0
        %s329 = scalar_select %p328, %s20, 0
        %s330 = smul.addr %s327, 7
        %s331 = sadd.s32 %s329, %s330
        %s332 = smul.addr %s331, 8
        %s333 = scalar_lea.vmem %s2, %s332
      $region40: #{tpu_custom_call.1} parent=35 // pred_fallthru
        _
    $region36: #{tpu_custom_call.1} parent=5 // pred_fallthru
      _
  $region6: #{tpu_custom_call.1} parent=0 // loop_footer
    %s12 = sadd.s32 1, %s8
  $region7: #{tpu_custom_call.1} parent=0 // loop_footer_branch
    %7 = sbr.rel target = $region3
  $region8: #{tpu_custom_call.1} parent=0 // loop_exit
    _

</llo_original>
